<compile_context>
chip_gen: v7x
topology: tpu7x:2x2x1
jax: 0.10.0
libtpu: 0.0.40
codegen_flags: <defaults>
</compile_context>

<pallas_src>
import functools
import math

import jax
import jax.numpy as jnp
from jax.experimental import pallas as pl
from jax.experimental.pallas import tpu as pltpu


# ----------------------------------------------------------------------------
# Buffer construction (mirrors PyTorch __init__)
# ----------------------------------------------------------------------------
def make_pe_table(d_model, max_len=5000):
    position = jnp.arange(max_len, dtype=jnp.float32)[:, None]            # (L, 1)
    div_term = jnp.exp(
        jnp.arange(0, d_model, 2, dtype=jnp.float32)
        * (-math.log(10000.0) / d_model)
    )                                                                      # (D//2,)
    angles = position * div_term                                           # (L, D//2)
    pe = jnp.zeros((max_len, d_model), dtype=jnp.float32)
    pe = pe.at[:, 0::2].set(jnp.sin(angles))
    pe = pe.at[:, 1::2].set(jnp.cos(angles))
    return pe                                                              # keep f32


# ----------------------------------------------------------------------------
# Kernel body (shared by all paths; broadcasting handles the 3-D case)
# ----------------------------------------------------------------------------
def _pe_add_kernel(x_ref, pe_ref, o_ref):
    # Add in f32 (pe is an f32 buffer in the PyTorch module), cast at store.
    x = x_ref[...].astype(jnp.float32)
    pe = pe_ref[...].astype(jnp.float32)
    o_ref[...] = (x + pe).astype(o_ref.dtype)


# ----------------------------------------------------------------------------
# Sizing helpers
# ----------------------------------------------------------------------------
def _sublane_multiple(dtype):
    itemsize = jnp.dtype(dtype).itemsize
    return {4: 8, 2: 16, 1: 32}.get(itemsize, 8)


def _vmem_capacity_bytes(default=64 * 1024 * 1024):
    # 64 MiB default is the v7x (smallest) physical VMEM; v5e/v6e report 128 MiB.
    try:
        return int(pltpu.get_tpu_info().vmem_capacity_bytes)
    except Exception:
        return default


def _choose_tile_rows(S, bytes_per_row, sub, budget_bytes, max_rows=2048):
    """Pick tile rows: as big as the VMEM budget allows, but >= 4 seq tiles."""
    # bytes_per_row already counts x + out + pe for one row of one block;
    # divide by 3 to leave room for double-buffering plus slack.
    rows = budget_bytes // max(1, 3 * bytes_per_row)
    rows = min(rows, max_rows)
    rows = max(sub, (rows // sub) * sub)
    # Guarantee >= 4 sequence tiles when S allows it so BlockSpec
    # double-buffering and the v7x two-TensorCore split both engage.
    if S >= 4 * sub:
        rows = min(rows, max(sub, ((S // 4) // sub) * sub))
    if rows >= S:
        return S            # single full block (block dim == array dim is legal)
    return rows


# ----------------------------------------------------------------------------
# Forward
# ----------------------------------------------------------------------------
def positional_encoding_forward(x, pe_table, *, tile_rows=None):
    """x: (S, B, D). pe_table: (max_len, D) float32. Returns x + pe[:S]."""
    S, B, D = x.shape
    max_len = pe_table.shape[0]
    if S > max_len:
        raise ValueError(f"seq_len {S} exceeds max_len {max_len}")

    itemsize = jnp.dtype(x.dtype).itemsize
    pe_itemsize = jnp.dtype(pe_table.dtype).itemsize
    sub = _sublane_multiple(x.dtype)

    vmem_cap = _vmem_capacity_bytes()
    budget_bytes = vmem_cap // 2                 # block budget (32 MiB v7x, 64 MiB v5e/v6e)
    vmem_limit_bytes = (vmem_cap * 3) // 4       # scoped limit above the 16/32 MiB defaults

    cost = pl.CostEstimate(
        flops=S * B * D,
        transcendentals=0,
        bytes_accessed=2 * S * B * D * itemsize + S * D * pe_itemsize,
    )

    # ---- pick a lane-dense layout whenever possible -------------------------
    lane_width = None
    pe_lane = None
    if D % 128 == 0:
        lane_width = D
        pe_lane = pe_table                                    # fed directly
    elif (128 % D == 0) and ((B * D) % 128 == 0):
        lane_width = 128
        pe_lane = jnp.tile(pe_table[:S], (1, 128 // D))       # (S, 128), tiny op

    if lane_width is not None:
        L = lane_width
        n_lane_blocks = (B * D) // L
        bytes_per_row = 2 * L * itemsize + L * pe_itemsize    # x + out + pe, one block row
        ts = tile_rows if tile_rows is not None else _choose_tile_rows(
            S, bytes_per_row, sub, budget_bytes)
        ts = min(ts, S)
        if ts < S:
            ts = max(sub, (ts // sub) * sub)                  # second-minor multiple of sub

        grid = (pl.cdiv(S, ts), n_lane_blocks)
        x2 = x.reshape(S, B * D)                              # free contiguous view

        out2 = pl.pallas_call(
            _pe_add_kernel,
            out_shape=jax.ShapeDtypeStruct((S, B * D), x.dtype),
            grid=grid,
            in_specs=[
                pl.BlockSpec((ts, L), lambda i, j: (i, j)),   # x tile
                pl.BlockSpec((ts, L), lambda i, j: (i, 0)),   # pe tile, resident across j
            ],
            out_specs=pl.BlockSpec((ts, L), lambda i, j: (i, j)),
            compiler_params=pltpu.CompilerParams(
                dimension_semantics=("parallel", "parallel"),
                vmem_limit_bytes=vmem_limit_bytes,
            ),
            cost_estimate=cost,
        )(x2, pe_lane)
        return out2.reshape(S, B, D)

    # ---- general 3-D fallback (D not lane-friendly): masked stores ----------
    # TODO(synk): could pad D to 128 in the wrapper to recover unmasked stores.
    pe3 = pe_table[:, None, :]                                # (max_len, 1, D), fed directly
    d_pad = ((D + 127) // 128) * 128
    b_pad = ((B + sub - 1) // sub) * sub
    bytes_per_row = 2 * b_pad * d_pad * itemsize + 8 * d_pad * pe_itemsize
    ts = tile_rows if tile_rows is not None else _choose_tile_rows(
        S, bytes_per_row, sub, budget_bytes)
    ts = min(ts, S)
    if ts < S:
        ts = max(sub, (ts // sub) * sub)

    return pl.pallas_call(
        _pe_add_kernel,
        out_shape=jax.ShapeDtypeStruct((S, B, D), x.dtype),
        grid=(pl.cdiv(S, ts),),
        in_specs=[
            pl.BlockSpec((ts, B, D), lambda i: (i, 0, 0)),
            pl.BlockSpec((ts, 1, D), lambda i: (i, 0, 0)),    # broadcast over batch
        ],
        out_specs=pl.BlockSpec((ts, B, D), lambda i: (i, 0, 0)),
        compiler_params=pltpu.CompilerParams(
            dimension_semantics=("parallel",),
            vmem_limit_bytes=vmem_limit_bytes,
        ),
        cost_estimate=cost,
    )(x, pe3)


# ----------------------------------------------------------------------------
# Self-test
# ----------------------------------------------------------------------------
if __name__ == "__main__":
    key = jax.random.PRNGKey(0)
    k1, k2, k3, k4 = jax.random.split(key, 4)

    # --- Test 1: lane-dense path (D % 128 == 0), auto tile sizing, f32 ------
    S1, B1, D1 = 64, 4, 128
    x1 = jax.random.normal(k1, (S1, B1, D1), dtype=jnp.float32)
    pe_tab1 = make_pe_table(D1, max_len=256)
    out1 = jax.block_until_ready(positional_encoding_forward(x1, pe_tab1))
    ref1 = x1 + pe_tab1[:S1][:, None, :]
    assert out1.shape == (S1, B1, D1)
    assert jnp.allclose(out1, ref1, atol=1e-6, rtol=1e-6)

    # --- Test 2: lane-dense path via lcm tiling (D=32, B*D multiple of 128) -
    S2, B2, D2 = 32, 4, 32
    x2 = jax.random.normal(k2, (S2, B2, D2), dtype=jnp.float32)
    pe_tab2 = make_pe_table(D2, max_len=64)
    out2 = jax.block_until_ready(
        positional_encoding_forward(x2, pe_tab2, tile_rows=8))   # grid = (4, 1)
    ref2 = x2 + pe_tab2[:S2][:, None, :]
    assert out2.shape == (S2, B2, D2)
    assert jnp.allclose(out2, ref2, atol=1e-6, rtol=1e-6)

    # --- Test 3: general 3-D fallback (D=48 not lane-friendly) --------------
    S3, B3, D3 = 24, 2, 48
    x3 = jax.random.normal(k3, (S3, B3, D3), dtype=jnp.float32)
    pe_tab3 = make_pe_table(D3, max_len=64)
    out3 = jax.block_until_ready(
        positional_encoding_forward(x3, pe_tab3, tile_rows=8))   # grid = (3,)
    ref3 = x3 + pe_tab3[:S3][:, None, :]
    assert out3.shape == (S3, B3, D3)
    assert jnp.allclose(out3, ref3, atol=1e-6, rtol=1e-6)

    # --- Test 4: bf16 input (sublane multiple 16), f32 accumulation ---------
    S4, B4, D4 = 64, 2, 128
    x4 = jax.random.normal(k4, (S4, B4, D4), dtype=jnp.float32).astype(jnp.bfloat16)
    pe_tab4 = make_pe_table(D4, max_len=128)
    out4 = jax.block_until_ready(
        positional_encoding_forward(x4, pe_tab4, tile_rows=16))  # grid = (4, 2)
    ref4 = (x4.astype(jnp.float32) + pe_tab4[:S4][:, None, :]).astype(jnp.bfloat16)
    assert out4.shape == (S4, B4, D4)
    assert out4.dtype == jnp.bfloat16
    assert jnp.allclose(out4.astype(jnp.float32), ref4.astype(jnp.float32),
                        atol=1e-2, rtol=1e-2)

    print("KERNEL_OK")
</pallas_src>

<mosaic_0001>
module attributes {stable_mosaic.version = 11 : i64} {
  func.func @_pe_add_kernel(%arg0: i32, %arg1: i32, %arg2: memref<16x128xf32, #tpu.memory_space<vmem>>, %arg3: memref<16x128xf32, #tpu.memory_space<vmem>>, %arg4: memref<16x128xf32, #tpu.memory_space<vmem>>) attributes {dimension_semantics = [#tpu.dimension_semantics<parallel>, #tpu.dimension_semantics<parallel>], iteration_bounds = array<i64: 4, 4>, scalar_prefetch = 0 : i64, scratch_operands = 0 : i64, tpu.core_type = #tpu.core_type<tc>, window_params = [{transform_indices = @transform_0, window_bounds = array<i64: 16, 128>}, {transform_indices = @transform_1, window_bounds = array<i64: 16, 128>}, {transform_indices = @transform_2, window_bounds = array<i64: 16, 128>}]} {
    %c0 = arith.constant 0 : index
    %c0_0 = arith.constant 0 : index
    %0 = vector.load %arg2[%c0, %c0_0] : memref<16x128xf32, #tpu.memory_space<vmem>>, vector<16x128xf32>
    %c0_1 = arith.constant 0 : index
    %c0_2 = arith.constant 0 : index
    %1 = vector.load %arg3[%c0_1, %c0_2] : memref<16x128xf32, #tpu.memory_space<vmem>>, vector<16x128xf32>
    %2 = arith.addf %0, %1 : vector<16x128xf32>
    %c0_3 = arith.constant 0 : index
    %c0_4 = arith.constant 0 : index
    %3 = vector.load %arg4[%c0_3, %c0_4] : memref<16x128xf32, #tpu.memory_space<vmem>>, vector<16x128xf32>
    tpu.vector_store %arg4[%c0_3, %c0_4], %2 {strides = array<i32>} : memref<16x128xf32, #tpu.memory_space<vmem>>, vector<16x128xf32>,
    return
  }
  func.func @transform_0(%arg0: i32, %arg1: i32) -> (i32, i32) {
    %c0_i32 = arith.constant 0 : i32
    return %arg0, %arg1 : i32, i32
  }
  func.func @transform_1(%arg0: i32, %arg1: i32) -> (i32, i32) {
    %c0_i32 = arith.constant 0 : i32
    %c0_i32_0 = arith.constant 0 : i32
    return %arg0, %c0_i32 : i32, i32
  }
  func.func @transform_2(%arg0: i32, %arg1: i32) -> (i32, i32) {
    %c0_i32 = arith.constant 0 : i32
    return %arg0, %arg1 : i32, i32
  }
}

</mosaic_0001>

<llo_original>
// kernel: tpu_custom_call.1
$region0: #{tpu_custom_call.1}
  #allocation0 [shape = 'u32[]', space=smem, size = 0x4, offset = 0x4, fixed_abs, tag = 'smem constant byte address 0x4 - core index']
  #allocation1 [shape = 'u32[144,128]{1,0:T(1,128)}', space=vmem, size = 0x12000, scoped, tag = 'internal scratch']
  %s0 = inlined_call_operand.hbm [shape: f32[64,512], index: 0, kind: input, shape index: {}]
  %s1 = inlined_call_operand.hbm [shape: f32[256,128], index: 1, kind: input, shape index: {}]
  %s2 = inlined_call_operand.hbm [shape: f32[64,512], index: 2, kind: output, shape index: {}]
  %s3 = sld [smem:[#allocation0]]
  $region49: #{tpu_custom_call.1} parent=0
    _
  %s5 = ssub.s32 1, %s3
  %s6 = scalar_select 0, %s5, %s3
  $region1: #{tpu_custom_call.1} parent=0
    #allocation2 [shape = 'u8[16384]{0}', space=vmem, size = 0x4000, scoped, tag = 'input window, operand 0']
    #allocation3 [shape = 's32[2]{0}', space=sflag, size = 0x8, scoped, tag = 'scoped memory for tpu_custom_call.1']
    #allocation4 [shape = 's32[2]{0}', space=sflag, size = 0x8, scoped, tag = 'scoped memory for tpu_custom_call.1']
    #allocation5 [shape = 'u8[16384]{0}', space=vmem, size = 0x4000, scoped, tag = 'input window, operand 1']
    #allocation6 [shape = 's32[2]{0}', space=sflag, size = 0x8, scoped, tag = 'scoped memory for tpu_custom_call.1']
    #allocation7 [shape = 'u8[16384]{0}', space=vmem, size = 0x4000, scoped, tag = 'output window, operand 0']
    %7 = vsyncpa [#allocation3], 0
    %s8 = scalar_lea.sflag [#allocation3], 1
    %9 = vsyncpa %s8, 0
    %10 = vsyncpa [#allocation6], 0
    %s11 = scalar_lea.sflag [#allocation6], 1
    %12 = vsyncpa %s11, 0
    %13 = vsyncpa [#allocation4], 0
    %s14 = scalar_lea.sflag [#allocation4], 1
    %15 = vsyncpa %s14, 0
    loop: start=0, step=1, limit=18
    $region2: #{tpu_custom_call.1} parent=1 // loop_pre_header
      _
    $region3: #{tpu_custom_call.1} parent=1 // loop_header
      %s17 = sphi 0, %s21
      %p18 = scmp.ge.s32.totalorder %s17, 18
      %s24 = sphi 0, %s36
      %s25 = sphi 0, %s32
      %s26 = sphi 0, %s24
      %s27 = sphi 0, %s25
      %s28 = sphi 0, %s26
      %s29 = sphi 0, %s27
      %s41 = sphi 0, %s43
      %s44 = sphi 0, %s41
      %s45 = sphi 0, %s44
      %s61 = sphi 0, %s45
      %s67 = sphi 0, %s69
      %s70 = sphi 0, %s67
      %s71 = sphi 0, %s70
      %s87 = sphi 0, %s71
      %s95 = sphi 0, %s97
      %s98 = sphi 0, %s95
      %s99 = sphi 0, %s98
      %s115 = sphi 0, %s99
    $region4: #{tpu_custom_call.1} parent=1 // loop_header_branch
      %20 = sbr.rel (%p18) target = $region8
    $region5: #{tpu_custom_call.1} parent=1 // loop_body
      %s22 = ssub.s32 %s17, 1
      %s23 = ssub.s32 %s17, 2
      %s30 = sadd.s32 1, %s25
      %p31 = scmp.ge.s32.totalorder %s30, 4
      %s32 = scalar_select %p31, 0, %s30
      %s33 = sadd.s32 1, %s24
      %s34 = scalar_select %p31, %s33, %s24
      %p35 = scmp.ge.s32.totalorder %s34, 4
      %s36 = scalar_select %p35, 0, %s34
      %s37 = ssub.s32 %s24, %s36
      %s38 = ssub.s32 %s25, %s32
      %s39 = sor.u32 %s37, %s38
      %p40 = scmp.eq.s32.totalorder %s39, 0
      %s42 = sadd.s32 %s41, 1
      %s43 = scalar_select %p40, %s41, %s42
      %p46 = pneg %p40
      %p47 = scmp.eq.s32.totalorder %s17, 15
      %p48 = por %p46, %p47
      %p49 = scmp.ne.s32.totalorder %s41, %s44
      %p50 = scmp.eq.s32.totalorder %s17, 0
      %p51 = por %p49, %p50
      %p52 = scmp.ne.s32.totalorder %s41, %s44
      %p53 = scmp.eq.s32.totalorder %s22, 15
      %p54 = por %p52, %p53
      %p55 = scmp.ne.s32.totalorder %s44, %s45
      %p56 = scmp.eq.s32.totalorder %s22, 0
      %p57 = por %p55, %p56
      %p58 = scmp.ne.s32.totalorder %s44, %s45
      %p59 = scmp.eq.s32.totalorder %s23, 15
      %p60 = por %p58, %p59
      %p62 = scmp.ne.s32.totalorder %s45, %s61
      %p63 = scmp.eq.s32.totalorder %s23, 0
      %p64 = por %p62, %p63
      %s65 = ssub.s32 %s24, %s36
      %p66 = scmp.eq.s32.totalorder %s65, 0
      %s68 = sadd.s32 %s67, 1
      %s69 = scalar_select %p66, %s67, %s68
      %p72 = pneg %p66
      %p73 = scmp.eq.s32.totalorder %s17, 15
      %p74 = por %p72, %p73
      %p75 = scmp.ne.s32.totalorder %s67, %s70
      %p76 = scmp.eq.s32.totalorder %s17, 0
      %p77 = por %p75, %p76
      %p78 = scmp.ne.s32.totalorder %s67, %s70
      %p79 = scmp.eq.s32.totalorder %s22, 15
      %p80 = por %p78, %p79
      %p81 = scmp.ne.s32.totalorder %s70, %s71
      %p82 = scmp.eq.s32.totalorder %s22, 0
      %p83 = por %p81, %p82
      %p84 = scmp.ne.s32.totalorder %s70, %s71
      %p85 = scmp.eq.s32.totalorder %s23, 15
      %p86 = por %p84, %p85
      %p88 = scmp.ne.s32.totalorder %s71, %s87
      %p89 = scmp.eq.s32.totalorder %s23, 0
      %p90 = por %p88, %p89
      %s91 = ssub.s32 %s24, %s36
      %s92 = ssub.s32 %s25, %s32
      %s93 = sor.u32 %s91, %s92
      %p94 = scmp.eq.s32.totalorder %s93, 0
      %s96 = sadd.s32 %s95, 1
      %s97 = scalar_select %p94, %s95, %s96
      %p100 = pneg %p94
      %p101 = scmp.eq.s32.totalorder %s17, 15
      %p102 = por %p100, %p101
      %p103 = scmp.ne.s32.totalorder %s95, %s98
      %p104 = scmp.eq.s32.totalorder %s17, 0
      %p105 = por %p103, %p104
      %p106 = scmp.ne.s32.totalorder %s95, %s98
      %p107 = scmp.eq.s32.totalorder %s22, 15
      %p108 = por %p106, %p107
      %p109 = scmp.ne.s32.totalorder %s98, %s99
      %p110 = scmp.eq.s32.totalorder %s22, 0
      %p111 = por %p109, %p110
      %p112 = scmp.ne.s32.totalorder %s98, %s99
      %p113 = scmp.eq.s32.totalorder %s23, 15
      %p114 = por %p112, %p113
      %p116 = scmp.ne.s32.totalorder %s99, %s115
      %p117 = scmp.eq.s32.totalorder %s23, 0
      %p118 = por %p116, %p117
      %p119 = scmp.le.s32.totalorder 1, %s17
      %p120 = scmp.lt.s32.totalorder %s17, 17
      %p121 = pnand %p119, %p120
      %p122 = pneg %p121
      // Predicated region
      $region9: #{tpu_custom_call.1} parent=5 // pred_check
        _
      $region10: #{tpu_custom_call.1} parent=5 // pred_check_branch
        %124 = sbr.rel (%p121) target = $region12
      $region11: #{tpu_custom_call.1} parent=5 // pred_region
        %s125 = ssub.s32 %s17, 1
      $region12: #{tpu_custom_call.1} parent=5 // pred_fallthru
        _
      %p126 = scmp.lt.s32.totalorder %s17, 16
      // Predicated region
      $region13: #{tpu_custom_call.1} parent=5 // pred_check
        %p127 = pneg %p126
      $region14: #{tpu_custom_call.1} parent=5 // pred_check_branch
        %129 = sbr.rel (%p127) target = $region16
      $region15: #{tpu_custom_call.1} parent=5 // pred_region
        // Predicated region
        $region17: #{tpu_custom_call.1} parent=15 // pred_check
          %p130 = pneg %p51
        $region18: #{tpu_custom_call.1} parent=15 // pred_check_branch
          %132 = sbr.rel (%p130) target = $region20
        $region19: #{tpu_custom_call.1} parent=15 // pred_region
          %s133 = sand.u32 %s41, 1
          %s134 = scalar_lea.sflag [#allocation3], %s133
          %s135 = sand.u32 %s41, 1
          %s136 = smul.addr %s135, 16
          %s137 = scalar_lea.vmem [#allocation2], %s136
          %s138 = smul.u32 2, %s24
          %s140 = ssub.s32 256, 256
          %141 = vsyncadd %s134, %s140
          %s142 = smul.addr %s138, 4
          %s143 = sadd.s32 %s25, %s142
          %s144 = smul.addr %s143, 128
          %s145 = scalar_lea.hbm %s0, %s144
          %s146 = sshll.u32 %s137, 4
          %s147 = int_to_ptr.vmem [resolvable:$true] %s146
          %152 = dma.hbm_to_vmem [thread:$0]  %s145, 256, %s147, %s134, 512, 128, 8
        $region20: #{tpu_custom_call.1} parent=15 // pred_fallthru
          _
        // Predicated region
        $region21: #{tpu_custom_call.1} parent=15 // pred_check
          %p153 = pneg %p77
        $region22: #{tpu_custom_call.1} parent=15 // pred_check_branch
          %155 = sbr.rel (%p153) target = $region24
        $region23: #{tpu_custom_call.1} parent=15 // pred_region
          %s156 = sand.u32 %s67, 1
          %s157 = scalar_lea.sflag [#allocation6], %s156
          %s158 = sand.u32 %s67, 1
          %s159 = smul.addr %s158, 16
          %s160 = scalar_lea.vmem [#allocation5], %s159
          %s161 = smul.u32 2, %s24
          %s163 = ssub.s32 256, 256
          %164 = vsyncadd %s157, %s163
          %s165 = smul.addr %s161, 128
          %s166 = scalar_lea.hbm %s1, %s165
          %s167 = sshll.u32 %s160, 4
          %s168 = int_to_ptr.vmem [resolvable:$true] %s167
          %173 = dma.hbm_to_vmem [thread:$0]  %s166, 256, %s168, %s157, 128, 128, 8
        $region24: #{tpu_custom_call.1} parent=15 // pred_fallthru
          _
      $region16: #{tpu_custom_call.1} parent=5 // pred_fallthru
        _
      %p174 = scmp.le.s32.totalorder 1, %s17
      %p175 = scmp.lt.s32.totalorder %s17, 17
      %p176 = pnand %p174, %p175
      %p177 = pneg %p176
      // Predicated region
      $region25: #{tpu_custom_call.1} parent=5 // pred_check
        _
      $region26: #{tpu_custom_call.1} parent=5 // pred_check_branch
        %179 = sbr.rel (%p176) target = $region28
      $region27: #{tpu_custom_call.1} parent=5 // pred_region
        %s180 = ssub.s32 %s17, 1
        %s181 = sand.u32 %s44, 1
        %s182 = scalar_lea.sflag [#allocation3], %s181
        %s183 = sand.u32 %s44, 1
        %s184 = smul.addr %s183, 16
        %s185 = scalar_lea.vmem [#allocation2], %s184
        // Predicated region
        $region29: #{tpu_custom_call.1} parent=27 // pred_check
          %p186 = pneg %p57
        $region30: #{tpu_custom_call.1} parent=27 // pred_check_branch
          %188 = sbr.rel (%p186) target = $region32
        $region31: #{tpu_custom_call.1} parent=27 // pred_region
          %189 = dma.done %s182, 256
        $region32: #{tpu_custom_call.1} parent=27 // pred_fallthru
          _
        %s190 = sand.u32 %s70, 1
        %s191 = scalar_lea.sflag [#allocation6], %s190
        %s192 = sand.u32 %s70, 1
        %s193 = smul.addr %s192, 16
        %s194 = scalar_lea.vmem [#allocation5], %s193
        // Predicated region
        $region33: #{tpu_custom_call.1} parent=27 // pred_check
          %p195 = pneg %p83
        $region34: #{tpu_custom_call.1} parent=27 // pred_check_branch
          %197 = sbr.rel (%p195) target = $region36
        $region35: #{tpu_custom_call.1} parent=27 // pred_region
          %198 = dma.done %s191, 256
        $region36: #{tpu_custom_call.1} parent=27 // pred_fallthru
          _
        %s199 = sand.u32 %s44, 1
        %s200 = scalar_lea.sflag [#allocation3], %s199
        %s201 = sand.u32 %s44, 1
        %s202 = smul.addr %s201, 16
        %s203 = scalar_lea.vmem [#allocation2], %s202
        %p204 = pneg %p57
        %p205 = pneg %p54
        %s206 = sand.u32 %s70, 1
        %s207 = scalar_lea.sflag [#allocation6], %s206
        %s208 = sand.u32 %s70, 1
        %s209 = smul.addr %s208, 16
        %s210 = scalar_lea.vmem [#allocation5], %s209
        %p211 = pneg %p83
        %p212 = pneg %p80
        %p213 = pneg %p111
        %p214 = pneg %p108
        %s215 = sand.u32 %s98, 1
        %s216 = scalar_lea.sflag [#allocation4], %s215
        %s217 = sand.u32 %s98, 1
        %s218 = smul.addr %s217, 16
        %s219 = scalar_lea.vmem [#allocation7], %s218
        %s220 = smul.u32 2, %s26
        %s221 = smul.u32 2, %s26
        %s222 = smul.u32 2, %s26
        %v223 = vld [vmem:[%s185] sm:$0xff]
        %v224 = vld [vmem:[%s185 + $0x8] sm:$0xff]
        %v225 = vld [vmem:[%s194] sm:$0xff]
        %v226 = vld [vmem:[%s194 + $0x8] sm:$0xff]
        %v227 = vadd.f32 %v223, %v225
        %v228 = vadd.f32 %v224, %v226
        %229 = vst [vmem:[%s219] sm:$0xff] %v227
        %230 = vst [vmem:[%s219 + $0x8] sm:$0xff] %v228
        %s231 = sand.u32 %s98, 1
        %s232 = scalar_lea.sflag [#allocation4], %s231
        %s233 = sand.u32 %s98, 1
        %s234 = smul.addr %s233, 16
        %s235 = scalar_lea.vmem [#allocation7], %s234
        // Predicated region
        $region37: #{tpu_custom_call.1} parent=27 // pred_check
          %p236 = pneg %p108
        $region38: #{tpu_custom_call.1} parent=27 // pred_check_branch
          %238 = sbr.rel (%p236) target = $region40
        $region39: #{tpu_custom_call.1} parent=27 // pred_region
          %s239 = smul.u32 2, %s26
          %s241 = ssub.s32 256, 256
          %242 = vsyncadd %s232, %s241
          %s243 = smul.addr %s239, 4
          %s244 = sadd.s32 %s27, %s243
          %s245 = smul.addr %s244, 128
          %s246 = scalar_lea.hbm %s2, %s245
          %s247 = sshll.u32 %s235, 4
          %s248 = int_to_ptr.vmem [resolvable:$true] %s247
          %253 = dma.vmem_to_hbm [thread:$0]  %s248, 256, %s246, %s232, 128, 512, 8
        $region40: #{tpu_custom_call.1} parent=27 // pred_fallthru
          _
      $region28: #{tpu_custom_call.1} parent=5 // pred_fallthru
        _
      %p254 = scmp.le.s32.totalorder 2, %s17
      // Predicated region
      $region41: #{tpu_custom_call.1} parent=5 // pred_check
        %p255 = pneg %p254
      $region42: #{tpu_custom_call.1} parent=5 // pred_check_branch
        %257 = sbr.rel (%p255) target = $region44
      $region43: #{tpu_custom_call.1} parent=5 // pred_region
        %s258 = ssub.s32 %s17, 2
        // Predicated region
        $region45: #{tpu_custom_call.1} parent=43 // pred_check
          %p259 = pneg %p114
        $region46: #{tpu_custom_call.1} parent=43 // pred_check_branch
          %261 = sbr.rel (%p259) target = $region48
        $region47: #{tpu_custom_call.1} parent=43 // pred_region
          %s262 = sand.u32 %s99, 1
          %s263 = scalar_lea.sflag [#allocation4], %s262
          %s264 = sand.u32 %s99, 1
          %s265 = smul.addr %s264, 16
          %s266 = scalar_lea.vmem [#allocation7], %s265
          %267 = dma.done %s263, 256
        $region48: #{tpu_custom_call.1} parent=43 // pred_fallthru
          _
      $region44: #{tpu_custom_call.1} parent=5 // pred_fallthru
        _
    $region6: #{tpu_custom_call.1} parent=1 // loop_footer
      %s21 = sadd.s32 1, %s17
    $region7: #{tpu_custom_call.1} parent=1 // loop_footer_branch
      %16 = sbr.rel target = $region3
    $region8: #{tpu_custom_call.1} parent=1 // loop_exit
      _
    %268 = vsyncpa [#allocation3], 1
    %s269 = scalar_lea.sflag [#allocation3], 1
    %270 = vsyncpa %s269, 1
    %271 = vsyncpa [#allocation6], 1
    %s272 = scalar_lea.sflag [#allocation6], 1
    %273 = vsyncpa %s272, 1
    %274 = vsyncpa [#allocation4], 1
    %s275 = scalar_lea.sflag [#allocation4], 1
    %276 = vsyncpa %s275, 1

</llo_original>
